<compile_context>
chip_gen: v6e
topology: v6e:2x2x1
jax: 0.10.0
libtpu: 0.0.40
codegen_flags: <defaults>
</compile_context>

<pallas_src>
import functools
import math

import jax
import jax.numpy as jnp
from jax.experimental import pallas as pl
from jax.experimental.pallas import tpu as pltpu

_LN2 = math.log(2.0)


def _dice_bce_kernel(x_ref, t_ref, inter_ref, xsum_ref, tsum_ref, bce_ref, *,
                     rows, ts):
    j = pl.program_id(1)          # reduction step within this core's column range

    @pl.when(j == 0)
    def _init():
        inter_ref[...] = jnp.zeros_like(inter_ref)
        xsum_ref[...] = jnp.zeros_like(xsum_ref)
        tsum_ref[...] = jnp.zeros_like(tsum_ref)
        bce_ref[...] = jnp.zeros_like(bce_ref)

    x = x_ref[...].astype(jnp.float32)   # (rows, ts, 128)
    t = t_ref[...].astype(jnp.float32)

    xt = x * t
    # Numerically stable BCE-with-logits: max(x,0) - x*t + log1p(exp(-|x|)).
    bce = jnp.maximum(x, 0.0) - xt + jnp.log1p(jnp.exp(-jnp.abs(x)))

    def fold(v):
        # (rows, ts, 128) -> (rows, ts//8, 8, 128), sum over the tile-group axis.
        # ts is a multiple of 8, so the reshape is layout-preserving and the
        # reduction is pure VPU vreg adds (no XLU, no repack) on the hot path.
        return v.reshape(rows, ts // 8, 8, 128).sum(axis=1)

    inter_ref[...] += fold(xt)
    xsum_ref[...] += fold(x)
    tsum_ref[...] += fold(t)
    bce_ref[...] += fold(bce)


def _vmem_config():
    """Generation-aware (tile VMEM budget, scoped vmem_limit_bytes)."""
    cap = None
    try:
        info = pltpu.get_tpu_info()
        for name in ("vmem_capacity_bytes", "vmem_size_bytes", "vmem_bytes"):
            v = getattr(info, name, None)
            if v:
                cap = int(v)
                break
    except Exception:
        cap = None
    if cap is not None and cap >= (100 << 20):
        # v5e / v6e: 128 MiB physical VMEM -> big tiles, long DMA bursts.
        return 64 << 20, 96 << 20
    # v7x (64 MiB per TensorCore) or unknown generation: stay conservative.
    return 36 << 20, 48 << 20


def dice_bce_loss(logits, target, *, num_classes=1, smooth=1e-6,
                  weight_dice=1.0, weight_bce=1.0,
                  max_sublane_tile=2048, num_core_splits=2):
    """logits/target: NCHW arrays of identical shape. Returns scalar f32 loss."""
    assert logits.shape == target.shape
    b = logits.shape[0]
    rows = b * num_classes
    x2 = logits.reshape(rows, -1)          # stream the narrow dtype, cast in-kernel
    t2 = target.reshape(rows, -1)
    n_true = x2.shape[1]
    # NOTE: for hard 0/1 masks, casting `target` to bf16 here would halve its
    # HBM stream exactly; left to the caller since soft labels would lose bits.

    in_item = jnp.dtype(x2.dtype).itemsize + jnp.dtype(t2.dtype).itemsize
    s_total = -(-n_true // 128)            # sublane-rows of 128 lanes per data row

    # ---- generation-aware tile sizing ----
    budget_bytes, vmem_limit = _vmem_config()
    # Resident bytes per sublane-row of tile: double-buffered inputs plus
    # ~5 f32-sized per-tile temporaries (x, t, x*t, bce, slack).
    bytes_per_sublane = rows * 128 * (2 * in_item + 5 * 4)
    # Per-core accumulator output blocks stay resident (x2 safety at block switch).
    fixed = 2 * 4 * rows * 8 * 128 * 4
    avail = max(budget_bytes - fixed, 1 << 20)
    ts_cap = max(8, min(int(max_sublane_tile), avail // bytes_per_sublane))
    ts_cap = max(8, (ts_cap // 8) * 8)

    total_tiles = -(-s_total // ts_cap)
    num_splits = num_core_splits if total_tiles >= num_core_splits else 1
    total_tiles = num_splits * (-(-total_tiles // num_splits))
    ts = -(-s_total // total_tiles)
    ts = max(8, ((ts + 7) // 8) * 8)
    s_pad = total_tiles * ts
    n_pad = s_pad * 128
    tiles_per_split = total_tiles // num_splits

    if n_pad != n_true:
        x2 = jnp.pad(x2, ((0, 0), (0, n_pad - n_true)))
        t2 = jnp.pad(t2, ((0, 0), (0, n_pad - n_true)))
    x3 = x2.reshape(rows, s_pad, 128)
    t3 = t2.reshape(rows, s_pad, 128)

    kernel = functools.partial(_dice_bce_kernel, rows=rows, ts=ts)

    acc_shape = jax.ShapeDtypeStruct((num_splits, rows, 8, 128), jnp.float32)
    acc_spec = pl.BlockSpec((None, rows, 8, 128), lambda c, j: (c, 0, 0, 0))
    in_spec = pl.BlockSpec(
        (rows, ts, 128),
        lambda c, j, tps=tiles_per_split: (0, c * tps + j, 0))

    cost = pl.CostEstimate(
        flops=int(10 * rows * n_pad),
        transcendentals=int(2 * rows * n_pad),
        bytes_accessed=int(rows * n_pad * in_item
                           + 4 * num_splits * rows * 8 * 128 * 4),
    )

    inter_acc, x_acc, t_acc, bce_acc = pl.pallas_call(
        kernel,
        out_shape=(acc_shape,) * 4,
        grid_spec=pltpu.PrefetchScalarGridSpec(
            num_scalar_prefetch=0,
            grid=(num_splits, tiles_per_split),
            in_specs=[in_spec, in_spec],
            out_specs=(acc_spec,) * 4,
        ),
        compiler_params=pltpu.CompilerParams(
            dimension_semantics=("parallel", "arbitrary"),
            vmem_limit_bytes=vmem_limit,
        ),
        cost_estimate=cost,
    )(x3, t3)

    # Tiny cross-core / cross-sublane / cross-lane combine in XLA.
    inter = inter_acc.sum(axis=(0, 2, 3))        # [rows]
    xs = x_acc.sum(axis=(0, 2, 3))
    tsum = t_acc.sum(axis=(0, 2, 3))
    dice = jnp.mean((2.0 * inter + smooth) / (xs + tsum + smooth))

    # Analytic padding correction: each zero-padded element contributes exactly
    # log1p(exp(0)) = ln 2 to the BCE sum; dice sums are unaffected (x = t = 0).
    pad_elems = rows * (n_pad - n_true)
    bce_mean = (bce_acc.sum() - pad_elems * _LN2) / (rows * n_true)

    return (weight_dice * dice + weight_bce * bce_mean).astype(jnp.float32)


def _reference(logits, target, *, num_classes=1, smooth=1e-6,
               weight_dice=1.0, weight_bce=1.0):
    b = logits.shape[0]
    x = logits.reshape(b, num_classes, -1).astype(jnp.float32)
    t = target.reshape(b, num_classes, -1).astype(jnp.float32)
    inter = jnp.sum(x * t, axis=2)
    dice = jnp.mean((2.0 * inter + smooth) / (jnp.sum(x, 2) + jnp.sum(t, 2) + smooth))
    xl = logits.astype(jnp.float32)
    tl = target.astype(jnp.float32)
    bce = jnp.mean(jnp.maximum(xl, 0.0) - xl * tl + jnp.log1p(jnp.exp(-jnp.abs(xl))))
    return weight_dice * dice + weight_bce * bce


if __name__ == "__main__":
    key = jax.random.PRNGKey(0)

    def run_case(case_key, shape, num_classes=1, **kw):
        k1, k2 = jax.random.split(case_key)
        logits = jax.random.normal(k1, shape, dtype=jnp.float32)
        target = (jax.random.uniform(k2, shape) > 0.5).astype(jnp.float32)
        got = jax.block_until_ready(
            dice_bce_loss(logits, target, num_classes=num_classes, **kw))
        ref = jax.block_until_ready(
            _reference(logits, target, num_classes=num_classes))
        assert jnp.allclose(got, ref, rtol=1e-5, atol=1e-5), (shape, got, ref)

    keys = jax.random.split(key, 5)
    # num_classes = 1 (module default): NCHW logits vs. binary mask.
    run_case(keys[0], (2, 4, 16, 16))                        # N multiple of 128, single tile
    run_case(keys[1], (2, 3, 11, 13))                        # ragged N -> analytic pad correction
    run_case(keys[2], (2, 1, 64, 64), max_sublane_tile=8)    # multi-step reduction + 2-way split
    run_case(keys[3], (2, 5, 17, 19), max_sublane_tile=8)    # 2-way split + ragged pad together
    run_case(keys[4], (2, 4, 16, 16), num_classes=2)         # multi-class dice rows

    print("KERNEL_OK")
</pallas_src>

<mosaic_0001>
module attributes {stable_mosaic.version = 11 : i64} {
  func.func @_dice_bce_kernel(%arg0: i32, %arg1: i32, %arg2: memref<2x8x128xf32, #tpu.memory_space<vmem>>, %arg3: memref<2x8x128xf32, #tpu.memory_space<vmem>>, %arg4: memref<1x2x8x128xf32, #tpu.memory_space<vmem>>, %arg5: memref<1x2x8x128xf32, #tpu.memory_space<vmem>>, %arg6: memref<1x2x8x128xf32, #tpu.memory_space<vmem>>, %arg7: memref<1x2x8x128xf32, #tpu.memory_space<vmem>>) attributes {dimension_semantics = [#tpu.dimension_semantics<parallel>, #tpu.dimension_semantics<arbitrary>], iteration_bounds = array<i64: 1, 1>, scalar_prefetch = 0 : i64, scratch_operands = 0 : i64, tpu.core_type = #tpu.core_type<tc>, window_params = [{transform_indices = @transform_0, window_bounds = array<i64: 2, 8, 128>}, {transform_indices = @transform_1, window_bounds = array<i64: 2, 8, 128>}, {transform_indices = @transform_2, window_bounds = array<i64: 1, 2, 8, 128>}, {transform_indices = @transform_3, window_bounds = array<i64: 1, 2, 8, 128>}, {transform_indices = @transform_4, window_bounds = array<i64: 1, 2, 8, 128>}, {transform_indices = @transform_5, window_bounds = array<i64: 1, 2, 8, 128>}]} {
    %c0_i32 = arith.constant 0 : i32
    %0 = arith.cmpi eq, %arg1, %c0_i32 : i32
    %1 = arith.extui %0 : i1 to i32
    %c0_i32_0 = arith.constant 0 : i32
    %2 = arith.cmpi ne, %1, %c0_i32_0 : i32
    scf.if %2 {
      %cst_43 = arith.constant 0.000000e+00 : f32
      %47 = vector.broadcast %cst_43 : f32 to vector<2x8x128xf32>
      %c0_44 = arith.constant 0 : index
      %c0_45 = arith.constant 0 : index
      %c0_46 = arith.constant 0 : index
      %c0_47 = arith.constant 0 : index
      %48 = vector.load %arg4[%c0_44, %c0_45, %c0_46, %c0_47] : memref<1x2x8x128xf32, #tpu.memory_space<vmem>>, vector<1x2x8x128xf32>
      %49 = vector.shape_cast %48 : vector<1x2x8x128xf32> to vector<2x8x128xf32>
      %50 = vector.shape_cast %47 : vector<2x8x128xf32> to vector<1x2x8x128xf32>
      tpu.vector_store %arg4[%c0_44, %c0_45, %c0_46, %c0_47], %50 {strides = array<i32>} : memref<1x2x8x128xf32, #tpu.memory_space<vmem>>, vector<1x2x8x128xf32>,
      %cst_48 = arith.constant 0.000000e+00 : f32
      %51 = vector.broadcast %cst_48 : f32 to vector<2x8x128xf32>
      %c0_49 = arith.constant 0 : index
      %c0_50 = arith.constant 0 : index
      %c0_51 = arith.constant 0 : index
      %c0_52 = arith.constant 0 : index
      %52 = vector.load %arg5[%c0_49, %c0_50, %c0_51, %c0_52] : memref<1x2x8x128xf32, #tpu.memory_space<vmem>>, vector<1x2x8x128xf32>
      %53 = vector.shape_cast %52 : vector<1x2x8x128xf32> to vector<2x8x128xf32>
      %54 = vector.shape_cast %51 : vector<2x8x128xf32> to vector<1x2x8x128xf32>
      tpu.vector_store %arg5[%c0_49, %c0_50, %c0_51, %c0_52], %54 {strides = array<i32>} : memref<1x2x8x128xf32, #tpu.memory_space<vmem>>, vector<1x2x8x128xf32>,
      %cst_53 = arith.constant 0.000000e+00 : f32
      %55 = vector.broadcast %cst_53 : f32 to vector<2x8x128xf32>
      %c0_54 = arith.constant 0 : index
      %c0_55 = arith.constant 0 : index
      %c0_56 = arith.constant 0 : index
      %c0_57 = arith.constant 0 : index
      %56 = vector.load %arg6[%c0_54, %c0_55, %c0_56, %c0_57] : memref<1x2x8x128xf32, #tpu.memory_space<vmem>>, vector<1x2x8x128xf32>
      %57 = vector.shape_cast %56 : vector<1x2x8x128xf32> to vector<2x8x128xf32>
      %58 = vector.shape_cast %55 : vector<2x8x128xf32> to vector<1x2x8x128xf32>
      tpu.vector_store %arg6[%c0_54, %c0_55, %c0_56, %c0_57], %58 {strides = array<i32>} : memref<1x2x8x128xf32, #tpu.memory_space<vmem>>, vector<1x2x8x128xf32>,
      %cst_58 = arith.constant 0.000000e+00 : f32
      %59 = vector.broadcast %cst_58 : f32 to vector<2x8x128xf32>
      %c0_59 = arith.constant 0 : index
      %c0_60 = arith.constant 0 : index
      %c0_61 = arith.constant 0 : index
      %c0_62 = arith.constant 0 : index
      %60 = vector.load %arg7[%c0_59, %c0_60, %c0_61, %c0_62] : memref<1x2x8x128xf32, #tpu.memory_space<vmem>>, vector<1x2x8x128xf32>
      %61 = vector.shape_cast %60 : vector<1x2x8x128xf32> to vector<2x8x128xf32>
      %62 = vector.shape_cast %59 : vector<2x8x128xf32> to vector<1x2x8x128xf32>
      tpu.vector_store %arg7[%c0_59, %c0_60, %c0_61, %c0_62], %62 {strides = array<i32>} : memref<1x2x8x128xf32, #tpu.memory_space<vmem>>, vector<1x2x8x128xf32>,
    } else {
    }
    %c0 = arith.constant 0 : index
    %c0_1 = arith.constant 0 : index
    %c0_2 = arith.constant 0 : index
    %3 = vector.load %arg2[%c0, %c0_1, %c0_2] : memref<2x8x128xf32, #tpu.memory_space<vmem>>, vector<2x8x128xf32>
    %c0_3 = arith.constant 0 : index
    %c0_4 = arith.constant 0 : index
    %c0_5 = arith.constant 0 : index
    %4 = vector.load %arg3[%c0_3, %c0_4, %c0_5] : memref<2x8x128xf32, #tpu.memory_space<vmem>>, vector<2x8x128xf32>
    %5 = arith.mulf %3, %4 : vector<2x8x128xf32>
    %cst = arith.constant 0.000000e+00 : f32
    %6 = vector.broadcast %cst : f32 to vector<2x8x128xf32>
    %7 = arith.maximumf %3, %6 : vector<2x8x128xf32>
    %8 = arith.subf %7, %5 : vector<2x8x128xf32>
    %9 = math.absf %3 : vector<2x8x128xf32>
    %cst_6 = arith.constant 0.000000e+00 : f32
    %10 = vector.broadcast %cst_6 : f32 to vector<2x8x128xf32>
    %11 = arith.subf %10, %9 : vector<2x8x128xf32>
    %12 = math.exp %11 : vector<2x8x128xf32>
    %13 = math.log1p %12 : vector<2x8x128xf32>
    %14 = arith.addf %8, %13 : vector<2x8x128xf32>
    %c0_7 = arith.constant 0 : index
    %c0_8 = arith.constant 0 : index
    %c0_9 = arith.constant 0 : index
    %c0_10 = arith.constant 0 : index
    %15 = vector.load %arg4[%c0_7, %c0_8, %c0_9, %c0_10] : memref<1x2x8x128xf32, #tpu.memory_space<vmem>>, vector<1x2x8x128xf32>
    %16 = vector.shape_cast %15 : vector<1x2x8x128xf32> to vector<2x8x128xf32>
    %17 = vector.shape_cast %5 : vector<2x8x128xf32> to vector<2x1x8x128xf32>
    %cst_11 = arith.constant dense<0.000000e+00> : vector<2x8x128xf32>
    %18 = vector.multi_reduction <add>, %17, %cst_11 [1] : vector<2x1x8x128xf32> to vector<2x8x128xf32>
    %19 = arith.addf %16, %18 : vector<2x8x128xf32>
    %c0_12 = arith.constant 0 : index
    %c0_13 = arith.constant 0 : index
    %c0_14 = arith.constant 0 : index
    %c0_15 = arith.constant 0 : index
    %20 = vector.load %arg4[%c0_12, %c0_13, %c0_14, %c0_15] : memref<1x2x8x128xf32, #tpu.memory_space<vmem>>, vector<1x2x8x128xf32>
    %21 = vector.shape_cast %20 : vector<1x2x8x128xf32> to vector<2x8x128xf32>
    %22 = vector.shape_cast %19 : vector<2x8x128xf32> to vector<1x2x8x128xf32>
    tpu.vector_store %arg4[%c0_12, %c0_13, %c0_14, %c0_15], %22 {strides = array<i32>} : memref<1x2x8x128xf32, #tpu.memory_space<vmem>>, vector<1x2x8x128xf32>,
    %c0_16 = arith.constant 0 : index
    %c0_17 = arith.constant 0 : index
    %c0_18 = arith.constant 0 : index
    %c0_19 = arith.constant 0 : index
    %23 = vector.load %arg5[%c0_16, %c0_17, %c0_18, %c0_19] : memref<1x2x8x128xf32, #tpu.memory_space<vmem>>, vector<1x2x8x128xf32>
    %24 = vector.shape_cast %23 : vector<1x2x8x128xf32> to vector<2x8x128xf32>
    %25 = vector.shape_cast %3 : vector<2x8x128xf32> to vector<2x1x8x128xf32>
    %cst_20 = arith.constant dense<0.000000e+00> : vector<2x8x128xf32>
    %26 = vector.multi_reduction <add>, %25, %cst_20 [1] : vector<2x1x8x128xf32> to vector<2x8x128xf32>
    %27 = arith.addf %24, %26 : vector<2x8x128xf32>
    %c0_21 = arith.constant 0 : index
    %c0_22 = arith.constant 0 : index
    %c0_23 = arith.constant 0 : index
    %c0_24 = arith.constant 0 : index
    %28 = vector.load %arg5[%c0_21, %c0_22, %c0_23, %c0_24] : memref<1x2x8x128xf32, #tpu.memory_space<vmem>>, vector<1x2x8x128xf32>
    %29 = vector.shape_cast %28 : vector<1x2x8x128xf32> to vector<2x8x128xf32>
    %30 = vector.shape_cast %27 : vector<2x8x128xf32> to vector<1x2x8x128xf32>
    tpu.vector_store %arg5[%c0_21, %c0_22, %c0_23, %c0_24], %30 {strides = array<i32>} : memref<1x2x8x128xf32, #tpu.memory_space<vmem>>, vector<1x2x8x128xf32>,
    %c0_25 = arith.constant 0 : index
    %c0_26 = arith.constant 0 : index
    %c0_27 = arith.constant 0 : index
    %c0_28 = arith.constant 0 : index
    %31 = vector.load %arg6[%c0_25, %c0_26, %c0_27, %c0_28] : memref<1x2x8x128xf32, #tpu.memory_space<vmem>>, vector<1x2x8x128xf32>
    %32 = vector.shape_cast %31 : vector<1x2x8x128xf32> to vector<2x8x128xf32>
    %33 = vector.shape_cast %4 : vector<2x8x128xf32> to vector<2x1x8x128xf32>
    %cst_29 = arith.constant dense<0.000000e+00> : vector<2x8x128xf32>
    %34 = vector.multi_reduction <add>, %33, %cst_29 [1] : vector<2x1x8x128xf32> to vector<2x8x128xf32>
    %35 = arith.addf %32, %34 : vector<2x8x128xf32>
    %c0_30 = arith.constant 0 : index
    %c0_31 = arith.constant 0 : index
    %c0_32 = arith.constant 0 : index
    %c0_33 = arith.constant 0 : index
    %36 = vector.load %arg6[%c0_30, %c0_31, %c0_32, %c0_33] : memref<1x2x8x128xf32, #tpu.memory_space<vmem>>, vector<1x2x8x128xf32>
    %37 = vector.shape_cast %36 : vector<1x2x8x128xf32> to vector<2x8x128xf32>
    %38 = vector.shape_cast %35 : vector<2x8x128xf32> to vector<1x2x8x128xf32>
    tpu.vector_store %arg6[%c0_30, %c0_31, %c0_32, %c0_33], %38 {strides = array<i32>} : memref<1x2x8x128xf32, #tpu.memory_space<vmem>>, vector<1x2x8x128xf32>,
    %c0_34 = arith.constant 0 : index
    %c0_35 = arith.constant 0 : index
    %c0_36 = arith.constant 0 : index
    %c0_37 = arith.constant 0 : index
    %39 = vector.load %arg7[%c0_34, %c0_35, %c0_36, %c0_37] : memref<1x2x8x128xf32, #tpu.memory_space<vmem>>, vector<1x2x8x128xf32>
    %40 = vector.shape_cast %39 : vector<1x2x8x128xf32> to vector<2x8x128xf32>
    %41 = vector.shape_cast %14 : vector<2x8x128xf32> to vector<2x1x8x128xf32>
    %cst_38 = arith.constant dense<0.000000e+00> : vector<2x8x128xf32>
    %42 = vector.multi_reduction <add>, %41, %cst_38 [1] : vector<2x1x8x128xf32> to vector<2x8x128xf32>
    %43 = arith.addf %40, %42 : vector<2x8x128xf32>
    %c0_39 = arith.constant 0 : index
    %c0_40 = arith.constant 0 : index
    %c0_41 = arith.constant 0 : index
    %c0_42 = arith.constant 0 : index
    %44 = vector.load %arg7[%c0_39, %c0_40, %c0_41, %c0_42] : memref<1x2x8x128xf32, #tpu.memory_space<vmem>>, vector<1x2x8x128xf32>
    %45 = vector.shape_cast %44 : vector<1x2x8x128xf32> to vector<2x8x128xf32>
    %46 = vector.shape_cast %43 : vector<2x8x128xf32> to vector<1x2x8x128xf32>
    tpu.vector_store %arg7[%c0_39, %c0_40, %c0_41, %c0_42], %46 {strides = array<i32>} : memref<1x2x8x128xf32, #tpu.memory_space<vmem>>, vector<1x2x8x128xf32>,
    return
  }
  func.func @transform_0(%arg0: i32, %arg1: i32) -> (i32, i32, i32) {
    %c1_i32 = arith.constant 1 : i32
    %0 = arith.muli %arg0, %c1_i32 : i32
    %1 = arith.addi %0, %arg1 : i32
    %c0_i32 = arith.constant 0 : i32
    %c0_i32_0 = arith.constant 0 : i32
    %c0_i32_1 = arith.constant 0 : i32
    return %c0_i32, %1, %c0_i32_0 : i32, i32, i32
  }
  func.func @transform_1(%arg0: i32, %arg1: i32) -> (i32, i32, i32) {
    %c1_i32 = arith.constant 1 : i32
    %0 = arith.muli %arg0, %c1_i32 : i32
    %1 = arith.addi %0, %arg1 : i32
    %c0_i32 = arith.constant 0 : i32
    %c0_i32_0 = arith.constant 0 : i32
    %c0_i32_1 = arith.constant 0 : i32
    return %c0_i32, %1, %c0_i32_0 : i32, i32, i32
  }
  func.func @transform_2(%arg0: i32, %arg1: i32) -> (i32, i32, i32, i32) {
    %c0_i32 = arith.constant 0 : i32
    %c0_i32_0 = arith.constant 0 : i32
    %c0_i32_1 = arith.constant 0 : i32
    %c0_i32_2 = arith.constant 0 : i32
    return %arg0, %c0_i32, %c0_i32_0, %c0_i32_1 : i32, i32, i32, i32
  }
  func.func @transform_3(%arg0: i32, %arg1: i32) -> (i32, i32, i32, i32) {
    %c0_i32 = arith.constant 0 : i32
    %c0_i32_0 = arith.constant 0 : i32
    %c0_i32_1 = arith.constant 0 : i32
    %c0_i32_2 = arith.constant 0 : i32
    return %arg0, %c0_i32, %c0_i32_0, %c0_i32_1 : i32, i32, i32, i32
  }
  func.func @transform_4(%arg0: i32, %arg1: i32) -> (i32, i32, i32, i32) {
    %c0_i32 = arith.constant 0 : i32
    %c0_i32_0 = arith.constant 0 : i32
    %c0_i32_1 = arith.constant 0 : i32
    %c0_i32_2 = arith.constant 0 : i32
    return %arg0, %c0_i32, %c0_i32_0, %c0_i32_1 : i32, i32, i32, i32
  }
  func.func @transform_5(%arg0: i32, %arg1: i32) -> (i32, i32, i32, i32) {
    %c0_i32 = arith.constant 0 : i32
    %c0_i32_0 = arith.constant 0 : i32
    %c0_i32_1 = arith.constant 0 : i32
    %c0_i32_2 = arith.constant 0 : i32
    return %arg0, %c0_i32, %c0_i32_0, %c0_i32_1 : i32, i32, i32, i32
  }
}

</mosaic_0001>

<llo_original>
// kernel: tpu_custom_call.1
$region0: #{tpu_custom_call.1}
  #allocation0 [shape = 'u32[]', space=smem, size = 0x4, offset = 0x4, fixed_abs, tag = 'smem constant byte address 0x4 - core index']
  #allocation1 [shape = 'u32[144,128]{1,0:T(1,128)}', space=vmem, size = 0x12000, scoped, tag = 'internal scratch']
  %s0 = inlined_call_operand.hbm [shape: f32[2,8,128], index: 0, kind: input, shape index: {}]
  %s1 = inlined_call_operand.hbm [shape: f32[2,8,128], index: 1, kind: input, shape index: {}]
  %s2 = inlined_call_operand.hbm [shape: f32[1,2,8,128], index: 2, kind: output, shape index: {0}]
  %s3 = inlined_call_operand.hbm [shape: f32[1,2,8,128], index: 3, kind: output, shape index: {1}]
  %s4 = inlined_call_operand.hbm [shape: f32[1,2,8,128], index: 4, kind: output, shape index: {2}]
  %s5 = inlined_call_operand.hbm [shape: f32[1,2,8,128], index: 5, kind: output, shape index: {3}]
  %6 = xla_tuple %s2, %s3, %s4, %s5
  %s7 = sld [smem:[#allocation0]]
  $region54: #{tpu_custom_call.1} parent=0
    _
  %s9 = ssub.s32 1, %s7
  %s10 = scalar_select 0, %s9, %s7
  $region1: #{tpu_custom_call.1} parent=0
    #allocation2 [shape = 'u8[8192]{0}', space=vmem, size = 0x2000, scoped, tag = 'input window, operand 0, single buffered']
    #allocation3 [shape = 's32[1]{0}', space=sflag, size = 0x4, scoped, tag = 'scoped memory for tpu_custom_call.1']
    #allocation4 [shape = 's32[1]{0}', space=sflag, size = 0x4, scoped, tag = 'scoped memory for tpu_custom_call.1']
    #allocation5 [shape = 'u8[8192]{0}', space=vmem, size = 0x2000, scoped, tag = 'input window, operand 1, single buffered']
    #allocation6 [shape = 's32[1]{0}', space=sflag, size = 0x4, scoped, tag = 'scoped memory for tpu_custom_call.1']
    #allocation7 [shape = 'u8[8192]{0}', space=vmem, size = 0x2000, scoped, tag = 'output window, operand 0, single buffered']
    #allocation8 [shape = 'u8[8192]{0}', space=vmem, size = 0x2000, scoped, tag = 'output window, operand 1, single buffered']
    #allocation9 [shape = 's32[1]{0}', space=sflag, size = 0x4, scoped, tag = 'scoped memory for tpu_custom_call.1']
    #allocation10 [shape = 'u8[8192]{0}', space=vmem, size = 0x2000, scoped, tag = 'output window, operand 2, single buffered']
    #allocation11 [shape = 'u8[8192]{0}', space=vmem, size = 0x2000, scoped, tag = 'output window, operand 3, single buffered']
    #allocation12 [shape = 's32[1]{0}', space=sflag, size = 0x4, scoped, tag = 'scoped memory for tpu_custom_call.1']
    %11 = vsyncpa [#allocation3], 0
    %12 = vsyncpa [#allocation6], 0
    %13 = vsyncpa [#allocation4], 0
    %14 = vsyncpa [#allocation9], 0
    %15 = vsyncpa [#allocation12], 0
    // Predicated region
    $region2: #{tpu_custom_call.1} parent=1 // pred_check
      _
    $region3: #{tpu_custom_call.1} parent=1 // pred_check_branch
      %17 = sbr.rel (0) target = $region5
    $region4: #{tpu_custom_call.1} parent=1 // pred_region
      %s18 = sadd.s32 0, 0
      %s20 = ssub.s32 256, 256
      %21 = vsyncadd [#allocation3], %s20
      %s22 = smul.addr %s18, 128
      %s23 = scalar_lea.hbm %s0, %s22
      %s24 = sshll.u32 [#allocation2], 4
      %s25 = int_to_ptr.vmem [resolvable:$true] %s24
      %30 = dma.hbm_to_vmem [thread:$0]  %s23, 256, %s25, [#allocation3], 128, 128, 8
    $region5: #{tpu_custom_call.1} parent=1 // pred_fallthru
      _
    // Predicated region
    $region6: #{tpu_custom_call.1} parent=1 // pred_check
      _
    $region7: #{tpu_custom_call.1} parent=1 // pred_check_branch
      %32 = sbr.rel (0) target = $region9
    $region8: #{tpu_custom_call.1} parent=1 // pred_region
      %s33 = sadd.s32 0, 0
      %s35 = ssub.s32 256, 256
      %36 = vsyncadd [#allocation6], %s35
      %s37 = smul.addr %s33, 128
      %s38 = scalar_lea.hbm %s1, %s37
      %s39 = sshll.u32 [#allocation5], 4
      %s40 = int_to_ptr.vmem [resolvable:$true] %s39
      %45 = dma.hbm_to_vmem [thread:$0]  %s38, 256, %s40, [#allocation6], 128, 128, 8
    $region9: #{tpu_custom_call.1} parent=1 // pred_fallthru
      _
    // Predicated region
    $region10: #{tpu_custom_call.1} parent=1 // pred_check
      _
    $region11: #{tpu_custom_call.1} parent=1 // pred_check_branch
      %47 = sbr.rel (0) target = $region13
    $region12: #{tpu_custom_call.1} parent=1 // pred_region
      %48 = dma.done [#allocation3], 256
    $region13: #{tpu_custom_call.1} parent=1 // pred_fallthru
      _
    // Predicated region
    $region14: #{tpu_custom_call.1} parent=1 // pred_check
      _
    $region15: #{tpu_custom_call.1} parent=1 // pred_check_branch
      %50 = sbr.rel (0) target = $region17
    $region16: #{tpu_custom_call.1} parent=1 // pred_region
      %51 = dma.done [#allocation6], 256
    $region17: #{tpu_custom_call.1} parent=1 // pred_fallthru
      _
    %s52 = sadd.s32 0, 0
    %s53 = sadd.s32 0, 0
    %p54 = scmp.eq.s32.totalorder 0, 0
    // Predicated region
    $region18: #{tpu_custom_call.1} parent=1 // pred_check
      %p55 = pneg %p54
    $region19: #{tpu_custom_call.1} parent=1 // pred_check_branch
      %57 = sbr.rel (%p55) target = $region21
    $region20: #{tpu_custom_call.1} parent=1 // pred_region
      %58 = vst [vmem:[#allocation7] sm:$0xff] 0.0
      %59 = vst [vmem:[#allocation7 + $0x8] sm:$0xff] 0.0
      %60 = vst [vmem:[#allocation8] sm:$0xff] 0.0
      %61 = vst [vmem:[#allocation8 + $0x8] sm:$0xff] 0.0
      %62 = vst [vmem:[#allocation10] sm:$0xff] 0.0
      %63 = vst [vmem:[#allocation10 + $0x8] sm:$0xff] 0.0
      %64 = vst [vmem:[#allocation11] sm:$0xff] 0.0
      %65 = vst [vmem:[#allocation11 + $0x8] sm:$0xff] 0.0
    $region21: #{tpu_custom_call.1} parent=1 // pred_fallthru
      _
    %v66 = vld [vmem:[#allocation2] sm:$0xff]
    %v67 = vld [vmem:[#allocation2 + $0x8] sm:$0xff]
    %v68 = vld [vmem:[#allocation5] sm:$0xff]
    %v69 = vld [vmem:[#allocation5 + $0x8] sm:$0xff]
    %v70 = vmul.f32 %v66, %v68
    %v71 = vmul.f32 %v67, %v69
    %v72 = vmax.f32 %v66, 0.0
    %v73 = vmax.f32 %v67, 0.0
    %v74 = vsub.f32 %v72, %v70
    %v75 = vsub.f32 %v73, %v71
    %v76 = vand.u32 2147483647, %v66
    %v77 = vand.u32 2147483647, %v67
    %v78 = vsub.f32 0.0, %v76
    %v79 = vsub.f32 0.0, %v77
    %v80 = vmul.f32 %v78, 1.442695
    %v81 = vpow.pop %v80
    %v82 = vmul.f32 %v79, 1.442695
    %v83 = vpow.pop %v82
    %v84 = vadd.f32 %v81, 1.0
    %v85 = vlog2.pop %v84
    %v86 = vmul.f32 %v85, 0.6931472
    %v87 = vmul.f32 -0.5, %v81
    %v88 = vadd.f32 %v87, 1.0
    %v89 = vmul.f32 %v88, %v81
    %v90 = vand.u32 2147483647, %v81
    %vm91 = vcmp.lt.f32.partialorder %v90, 0.0004427343
    %v92 = vsel %vm91, %v89, %v86
    %v93 = vadd.f32 %v83, 1.0
    %v94 = vlog2.pop %v93
    %v95 = vmul.f32 %v94, 0.6931472
    %v96 = vmul.f32 -0.5, %v83
    %v97 = vadd.f32 %v96, 1.0
    %v98 = vmul.f32 %v97, %v83
    %v99 = vand.u32 2147483647, %v83
    %vm100 = vcmp.lt.f32.partialorder %v99, 0.0004427343
    %v101 = vsel %vm100, %v98, %v95
    %v102 = vadd.f32 %v74, %v92
    %v103 = vadd.f32 %v75, %v101
    %v104 = vld [vmem:[#allocation7] sm:$0xff]
    %v105 = vld [vmem:[#allocation7 + $0x8] sm:$0xff]
    %v106 = vadd.f32 %v70, 0.0
    %v107 = vadd.f32 %v71, 0.0
    %v108 = vadd.f32 %v104, %v106
    %v109 = vadd.f32 %v105, %v107
    %110 = vst [vmem:[#allocation7] sm:$0xff] %v108
    %111 = vst [vmem:[#allocation7 + $0x8] sm:$0xff] %v109
    %v112 = vld [vmem:[#allocation8] sm:$0xff]
    %v113 = vld [vmem:[#allocation8 + $0x8] sm:$0xff]
    %v114 = vadd.f32 %v66, 0.0
    %v115 = vadd.f32 %v67, 0.0
    %v116 = vadd.f32 %v112, %v114
    %v117 = vadd.f32 %v113, %v115
    %118 = vst [vmem:[#allocation8] sm:$0xff] %v116
    %119 = vst [vmem:[#allocation8 + $0x8] sm:$0xff] %v117
    %v120 = vld [vmem:[#allocation10] sm:$0xff]
    %v121 = vld [vmem:[#allocation10 + $0x8] sm:$0xff]
    %v122 = vadd.f32 %v68, 0.0
    %v123 = vadd.f32 %v69, 0.0
    %v124 = vadd.f32 %v120, %v122
    %v125 = vadd.f32 %v121, %v123
    %126 = vst [vmem:[#allocation10] sm:$0xff] %v124
    %127 = vst [vmem:[#allocation10 + $0x8] sm:$0xff] %v125
    %v128 = vld [vmem:[#allocation11] sm:$0xff]
    %v129 = vld [vmem:[#allocation11 + $0x8] sm:$0xff]
    %v130 = vadd.f32 %v102, 0.0
    %v131 = vadd.f32 %v103, 0.0
    %v132 = vadd.f32 %v128, %v130
    %v133 = vadd.f32 %v129, %v131
    %134 = vst [vmem:[#allocation11] sm:$0xff] %v132
    %135 = vst [vmem:[#allocation11 + $0x8] sm:$0xff] %v133
    // Predicated region
    $region22: #{tpu_custom_call.1} parent=1 // pred_check
      _
    $region23: #{tpu_custom_call.1} parent=1 // pred_check_branch
      %137 = sbr.rel (0) target = $region25
    $region24: #{tpu_custom_call.1} parent=1 // pred_region
      %s139 = ssub.s32 256, 256
      %140 = vsyncadd [#allocation4], %s139
      %s141 = sshll.u32 [#allocation7], 4
      %s142 = int_to_ptr.vmem [resolvable:$true] %s141
      %147 = dma.vmem_to_hbm [thread:$0]  %s142, 256, %s2, [#allocation4], 128, 128, 8
    $region25: #{tpu_custom_call.1} parent=1 // pred_fallthru
      _
    // Predicated region
    $region26: #{tpu_custom_call.1} parent=1 // pred_check
      _
    $region27: #{tpu_custom_call.1} parent=1 // pred_check_branch
      %149 = sbr.rel (0) target = $region29
    $region28: #{tpu_custom_call.1} parent=1 // pred_region
      %s151 = ssub.s32 256, 256
      %152 = vsyncadd [#allocation9], %s151
      %s153 = sshll.u32 [#allocation8], 4
      %s154 = int_to_ptr.vmem [resolvable:$true] %s153
      %159 = dma.vmem_to_hbm [thread:$0]  %s154, 256, %s3, [#allocation9], 128, 128, 8
    $region29: #{tpu_custom_call.1} parent=1 // pred_fallthru
      _
    // Predicated region
    $region30: #{tpu_custom_call.1} parent=1 // pred_check
      _
    $region31: #{tpu_custom_call.1} parent=1 // pred_check_branch
      %161 = sbr.rel (0) target = $region33
    $region32: #{tpu_custom_call.1} parent=1 // pred_region
      %s163 = ssub.s32 256, 256
      %164 = vsyncadd [#allocation9], %s163
      %s165 = sshll.u32 [#allocation10], 4
      %s166 = int_to_ptr.vmem [resolvable:$true] %s165
      %171 = dma.vmem_to_hbm [thread:$0]  %s166, 256, %s4, [#allocation9], 128, 128, 8
    $region33: #{tpu_custom_call.1} parent=1 // pred_fallthru
      _
    // Predicated region
    $region34: #{tpu_custom_call.1} parent=1 // pred_check
      _
    $region35: #{tpu_custom_call.1} parent=1 // pred_check_branch
      %173 = sbr.rel (0) target = $region37
    $region36: #{tpu_custom_call.1} parent=1 // pred_region
      %s175 = ssub.s32 256, 256
      %176 = vsyncadd [#allocation12], %s175
      %s177 = sshll.u32 [#allocation11], 4
      %s178 = int_to_ptr.vmem [resolvable:$true] %s177
      %183 = dma.vmem_to_hbm [thread:$0]  %s178, 256, %s5, [#allocation12], 128, 128, 8
    $region37: #{tpu_custom_call.1} parent=1 // pred_fallthru
      _
    // Predicated region
    $region38: #{tpu_custom_call.1} parent=1 // pred_check
      _
    $region39: #{tpu_custom_call.1} parent=1 // pred_check_branch
      %185 = sbr.rel (0) target = $region41
    $region40: #{tpu_custom_call.1} parent=1 // pred_region
      %186 = dma.done [#allocation4], 256
    $region41: #{tpu_custom_call.1} parent=1 // pred_fallthru
      _
    // Predicated region
    $region42: #{tpu_custom_call.1} parent=1 // pred_check
      _
    $region43: #{tpu_custom_call.1} parent=1 // pred_check_branch
      %188 = sbr.rel (0) target = $region45
    $region44: #{tpu_custom_call.1} parent=1 // pred_region
      %189 = dma.done [#allocation9], 256
    $region45: #{tpu_custom_call.1} parent=1 // pred_fallthru
      _
    // Predicated region
    $region46: #{tpu_custom_call.1} parent=1 // pred_check
      _
    $region47: #{tpu_custom_call.1} parent=1 // pred_check_branch
      %191 = sbr.rel (0) target = $region49
    $region48: #{tpu_custom_call.1} parent=1 // pred_region
      %192 = dma.done [#allocation9], 256
    $region49: #{tpu_custom_call.1} parent=1 // pred_fallthru
      _
    // Predicated region
    $region50: #{tpu_custom_call.1} parent=1 // pred_check
      _
    $region51: #{tpu_custom_call.1} parent=1 // pred_check_branch
      %194 = sbr.rel (0) target = $region53
    $region52: #{tpu_custom_call.1} parent=1 // pred_region
      %195 = dma.done [#allocation12], 256
    $region53: #{tpu_custom_call.1} parent=1 // pred_fallthru
      _
    %196 = vsyncpa [#allocation3], 1
    %197 = vsyncpa [#allocation6], 1
    %198 = vsyncpa [#allocation4], 1
    %199 = vsyncpa [#allocation9], 1
    %200 = vsyncpa [#allocation12], 1

</llo_original>
